<compile_context>
chip_gen: v6e
topology: v6e:2x2x1
jax: 0.10.0
libtpu: 0.0.40
codegen_flags: <defaults>
</compile_context>

<pallas_src>
import math

import jax
import jax.numpy as jnp
from jax.experimental import pallas as pl
from jax.experimental.pallas import tpu as pltpu


_KQV_LANES = 128        # pad the 3-wide kqv projection to a lane-dense 128
_VMEM_LIMIT = 32 * 1024 * 1024


def _round_up(n, m):
    return ((n + m - 1) // m) * m


# -----------------------------------------------------------------------------
# Pallas kernel 1: LayerNorm over feature dim + kqv linear projection
# (weights padded to 128 lanes -> lane-dense output store).
# Grid axis 0 = node type.
# -----------------------------------------------------------------------------
def _ln_kqv_kernel(x_ref, gamma_ref, beta_ref, w_ref, b_ref, kqv_ref):
    x = x_ref[0]                                            # (Npad, d) f32
    mean = jnp.mean(x, axis=-1, keepdims=True)
    xc = x - mean
    var = jnp.mean(xc * xc, axis=-1, keepdims=True)
    xn = xc * jax.lax.rsqrt(var + 1e-5)
    xn = xn * gamma_ref[0] + beta_ref[0]                    # affine LayerNorm
    kqv_ref[0] = (
        jnp.dot(xn, w_ref[0], preferred_element_type=jnp.float32) + b_ref[0]
    )


def ln_kqv_fused(x_all, gamma_all, beta_all, w_all, b_all):
    T, Npad, d = x_all.shape
    kpad = w_all.shape[-1]
    return pl.pallas_call(
        _ln_kqv_kernel,
        out_shape=jax.ShapeDtypeStruct((T, Npad, kpad), jnp.float32),
        grid_spec=pltpu.PrefetchScalarGridSpec(
            num_scalar_prefetch=0,
            grid=(T,),
            in_specs=[
                pl.BlockSpec((1, Npad, d), lambda t: (t, 0, 0)),
                pl.BlockSpec((1, 1, d), lambda t: (t, 0, 0)),
                pl.BlockSpec((1, 1, d), lambda t: (t, 0, 0)),
                pl.BlockSpec((1, d, kpad), lambda t: (t, 0, 0)),
                pl.BlockSpec((1, 1, kpad), lambda t: (t, 0, 0)),
            ],
            out_specs=pl.BlockSpec((1, Npad, kpad), lambda t: (t, 0, 0)),
        ),
        compiler_params=pltpu.CompilerParams(
            dimension_semantics=("parallel",),
            vmem_limit_bytes=_VMEM_LIMIT,
        ),
    )(x_all, gamma_all, beta_all, w_all, b_all)


# -----------------------------------------------------------------------------
# Pallas kernel 2: LayerNorm recompute + per-batch segment softmax of scores +
# weighted add-pool + masked max-pool + final MLP.  Grid axis 0 = node type.
# -----------------------------------------------------------------------------
def _pool_mlp_kernel(x_ref, gamma_ref, beta_ref, score_ref, batch_ref,
                     w_ref, b_ref, out_ref):
    B = out_ref.shape[1]
    neg = jnp.float32(-1e30)

    # Recompute LayerNorm from x (cheap VPU work; avoids xn HBM round-trip).
    x = x_ref[0]                                            # (Npad, d) f32
    mean = jnp.mean(x, axis=-1, keepdims=True)
    xc = x - mean
    var = jnp.mean(xc * xc, axis=-1, keepdims=True)
    xn = xc * jax.lax.rsqrt(var + 1e-5) * gamma_ref[0] + beta_ref[0]

    s = score_ref[0]                                        # (1, Npad) f32
    batch = batch_ref[0]                                    # (1, Npad) i32 (-1 = pad)
    npad = batch.shape[-1]

    # Batch-membership mask built in-kernel (no dense one-hot input).
    iota_b = jax.lax.broadcasted_iota(jnp.int32, (B, npad), 0)
    mask = batch == iota_b                                  # (B, Npad)

    # Segment softmax per batch, (B, Npad) layout, lane reductions only.
    masked = jnp.where(mask, s, neg)
    smax = jnp.max(masked, axis=-1, keepdims=True)          # (B, 1)
    e = jnp.where(mask, jnp.exp(masked - smax), 0.0)        # (B, Npad)
    denom = jnp.sum(e, axis=-1, keepdims=True)              # (B, 1)
    inv = pl.reciprocal(jnp.maximum(denom, jnp.float32(1e-30)), approx=True)
    wsm = e * inv                                           # per-batch softmax

    # Weighted add-pool on the MXU (bf16 in, f32 accumulate).
    add_pool = jnp.dot(wsm.astype(jnp.bfloat16), xn.astype(jnp.bfloat16),
                       preferred_element_type=jnp.float32)  # (B, d)

    # Masked max-pool of weighted features: single fused select + reduce.
    cand = jnp.where(mask[:, :, None], wsm[:, :, None] * xn[None, :, :], neg)
    max_pool = jnp.max(cand, axis=1)                        # (B, d)

    # Empty-batch guard: both pools -> 0 (matches global_add/max_pool).
    has_nodes = denom > 0.0                                 # (B, 1)
    add_pool = jnp.where(has_nodes, add_pool, 0.0)
    max_pool = jnp.where(has_nodes, max_pool, 0.0)

    pooled = jnp.concatenate([add_pool, max_pool], axis=-1)  # (B, 2d)
    out_ref[0] = (
        jnp.dot(pooled.astype(jnp.bfloat16), w_ref[0],
                preferred_element_type=jnp.float32) + b_ref[0]
    )


def pool_mlp_fused(x_all, gamma_all, beta_all, score_all, batch_all,
                   w_all, b_all, batch_size):
    T, Npad, d = x_all.shape
    B = batch_size
    return pl.pallas_call(
        _pool_mlp_kernel,
        out_shape=jax.ShapeDtypeStruct((T, B, d), jnp.float32),
        grid_spec=pltpu.PrefetchScalarGridSpec(
            num_scalar_prefetch=0,
            grid=(T,),
            in_specs=[
                pl.BlockSpec((1, Npad, d), lambda t: (t, 0, 0)),
                pl.BlockSpec((1, 1, d), lambda t: (t, 0, 0)),
                pl.BlockSpec((1, 1, d), lambda t: (t, 0, 0)),
                pl.BlockSpec((1, 1, Npad), lambda t: (t, 0, 0)),
                pl.BlockSpec((1, 1, Npad), lambda t: (t, 0, 0)),
                pl.BlockSpec((1, 2 * d, d), lambda t: (t, 0, 0)),
                pl.BlockSpec((1, 1, d), lambda t: (t, 0, 0)),
            ],
            out_specs=pl.BlockSpec((1, B, d), lambda t: (t, 0, 0)),
        ),
        compiler_params=pltpu.CompilerParams(
            dimension_semantics=("parallel",),
            vmem_limit_bytes=_VMEM_LIMIT,
        ),
    )(x_all, gamma_all, beta_all, score_all, batch_all, w_all, b_all)


# -----------------------------------------------------------------------------
# HGTConv score computation (heads=1, head_dim=1, out_channels=1).
# TODO(synk): edge-level gather + segment softmax kept in plain JAX
# (data-dependent indexing; negligible compute at out_channels=1).
# -----------------------------------------------------------------------------
def hgt_scores(kqv_dict, edge_index_dict, params, node_types, edge_types):
    # split kqv (N, 3) -> k | q | v  (each (N, 1) since H = D = 1)
    k_dict = {nt: kqv_dict[nt][:, 0:1] for nt in node_types}
    q_dict = {nt: kqv_dict[nt][:, 1:2] for nt in node_types}
    v_dict = {nt: kqv_dict[nt][:, 2:3] for nt in node_types}

    # concatenate source-side k/v per edge type, apply per-relation linear
    ks, vs = [], []
    src_offset = {}
    cum = 0
    for i, et in enumerate(edge_types):
        src = et[0]
        n_src = k_dict[src].shape[0]
        src_offset[et] = cum
        cum += n_src
        ks.append(k_dict[src] * params["k_rel_w"][i] + params["k_rel_b"][i])
        vs.append(v_dict[src] * params["v_rel_w"][i] + params["v_rel_b"][i])
    k = jnp.concatenate(ks, axis=0)                         # (total_src, 1)
    v = jnp.concatenate(vs, axis=0)

    # concatenate destination-side q per node type
    dst_offset = {}
    cum = 0
    qs = []
    for nt in node_types:
        dst_offset[nt] = cum
        cum += q_dict[nt].shape[0]
        qs.append(q_dict[nt])
    q = jnp.concatenate(qs, axis=0)                         # (total_dst, 1)
    n_dst = q.shape[0]

    # bipartite edge index with offsets + relation prior p_rel
    src_idx, dst_idx, eattr = [], [], []
    for i, et in enumerate(edge_types):
        ei = edge_index_dict[et]                            # (2, E)
        src_idx.append(ei[0] + src_offset[et])
        dst_idx.append(ei[1] + dst_offset[et[2]])
        eattr.append(jnp.broadcast_to(params["p_rel"][i], (ei.shape[1], 1)))
    src_idx = jnp.concatenate(src_idx)
    dst_idx = jnp.concatenate(dst_idx)
    eattr = jnp.concatenate(eattr, axis=0)                  # (E_total, 1)

    # message + softmax over destination + add aggregation
    alpha = (q[dst_idx] * k[src_idx]) * eattr / math.sqrt(1.0)   # (E, 1)
    # segment_max rows for dsts with no edges are -inf but never gathered
    # (only dst_idx entries are read), so no inf/NaN reaches dense math.
    amax = jax.ops.segment_max(alpha, dst_idx, num_segments=n_dst)
    alpha = jnp.exp(alpha - amax[dst_idx])
    denom = jax.ops.segment_sum(alpha, dst_idx, num_segments=n_dst)
    alpha = alpha / denom[dst_idx]
    msg = v[src_idx] * alpha
    aggr = jax.ops.segment_sum(msg, dst_idx, num_segments=n_dst)  # (n_dst, 1)

    # per-type output linear + exact GELU (skip branch inactive: 1 != in_ch)
    score_dict = {}
    for nt in node_types:
        start = dst_offset[nt]
        n = q_dict[nt].shape[0]
        a = jax.lax.dynamic_slice_in_dim(aggr, start, n, axis=0)
        score = a * params["out_lin_w"][nt] + params["out_lin_b"][nt]
        score_dict[nt] = jax.nn.gelu(score, approximate=False)
    return score_dict


# -----------------------------------------------------------------------------
# Full HetSAGPooling forward.  batch_size is a static Python int.
# -----------------------------------------------------------------------------
def het_sag_pooling(params, x_dict, edge_index_dict, batch_dict,
                    node_types, edge_types, batch_size):
    T = len(node_types)
    d_list = [x_dict[nt].shape[1] for nt in node_types]
    d = d_list[0]
    # TODO(synk): fused type-grid path assumes equal channels per node type
    # (the common int-in_channels case); per-type channels would need ragged
    # tiling via scalar-prefetch row offsets.
    assert all(di == d for di in d_list), "fused path needs equal in_channels"

    n_per_type = [x_dict[nt].shape[0] for nt in node_types]
    npad = max(_round_up(n, 8) for n in n_per_type)

    # ---- stack per-type tensors into (T, ...) slabs (single launch each) ----
    x_all = jnp.stack([
        jnp.pad(x_dict[nt], ((0, npad - n_per_type[i]), (0, 0)))
        for i, nt in enumerate(node_types)])                      # (T,Npad,d)
    gamma_all = jnp.stack([params["ln"][nt][0].reshape(1, d)
                           for nt in node_types])                 # (T,1,d)
    beta_all = jnp.stack([params["ln"][nt][1].reshape(1, d)
                          for nt in node_types])                  # (T,1,d)
    w_kqv_all = jnp.stack([
        jnp.pad(params["kqv"][nt][0], ((0, 0), (0, _KQV_LANES - 3)))
        for nt in node_types])                                    # (T,d,128)
    b_kqv_all = jnp.stack([
        jnp.pad(params["kqv"][nt][1], (0, _KQV_LANES - 3)).reshape(1, _KQV_LANES)
        for nt in node_types])                                    # (T,1,128)

    # 1) LayerNorm + kqv projection (one gridded Pallas call, lane-dense out)
    kqv_all = ln_kqv_fused(x_all, gamma_all, beta_all, w_kqv_all, b_kqv_all)
    kqv_dict = {nt: kqv_all[i, :n_per_type[i], :3]
                for i, nt in enumerate(node_types)}

    # 2) HGT attention scores (JAX glue, scalar math)
    score_dict = hgt_scores(kqv_dict, edge_index_dict, params,
                            node_types, edge_types)

    # 3) segment softmax + add/max pooling + MLP (one gridded Pallas call)
    score_all = jnp.stack([
        jnp.pad(score_dict[nt][:, 0], (0, npad - n_per_type[i])).reshape(1, npad)
        for i, nt in enumerate(node_types)])                      # (T,1,Npad)
    batch_all = jnp.stack([
        jnp.pad(batch_dict[nt].astype(jnp.int32),
                (0, npad - n_per_type[i]), constant_values=-1).reshape(1, npad)
        for i, nt in enumerate(node_types)])                      # (T,1,Npad)
    w_mlp_all = jnp.stack([params["mlp"][nt][0] for nt in node_types]
                          ).astype(jnp.bfloat16)                  # (T,2d,d)
    b_mlp_all = jnp.stack([params["mlp"][nt][1].reshape(1, d)
                           for nt in node_types])                 # (T,1,d)

    out = pool_mlp_fused(x_all, gamma_all, beta_all, score_all, batch_all,
                         w_mlp_all, b_mlp_all, batch_size)        # (T,B,d)

    # concat over node types along features: (T,B,d) -> (B, T*d)
    return jnp.transpose(out, (1, 0, 2)).reshape(batch_size, T * d)


# -----------------------------------------------------------------------------
# Deterministic parameter initialization (shapes follow the module __init__)
# -----------------------------------------------------------------------------
def _kaiming_uniform(key, shape, fan_in):
    bound = math.sqrt(6.0 / fan_in)
    return jax.random.uniform(key, shape, jnp.float32, -bound, bound)


def init_params(key, node_types, edge_types, in_channels):
    num_et = len(edge_types)
    keys = iter(jax.random.split(key, 8 * len(node_types) + 8))
    params = {
        "ln": {}, "kqv": {}, "out_lin_w": {}, "out_lin_b": {}, "mlp": {},
        # HeteroLinear(head_dim=1 -> 1) per relation (heads * num_edge_types)
        "k_rel_w": _kaiming_uniform(next(keys), (num_et,), 1),
        "k_rel_b": 0.1 * jax.random.normal(next(keys), (num_et,), jnp.float32),
        "v_rel_w": _kaiming_uniform(next(keys), (num_et,), 1),
        "v_rel_b": 0.1 * jax.random.normal(next(keys), (num_et,), jnp.float32),
        # p_rel initialized to ones (reset_parameters)
        "p_rel": jnp.ones((num_et,), jnp.float32),
    }
    for nt in node_types:
        d = in_channels[nt]
        params["ln"][nt] = (jnp.ones((d,), jnp.float32),
                            jnp.zeros((d,), jnp.float32))
        params["kqv"][nt] = (
            _kaiming_uniform(next(keys), (d, 3), d),          # out = 3 * 1
            0.1 * jax.random.normal(next(keys), (3,), jnp.float32),
        )
        params["out_lin_w"][nt] = _kaiming_uniform(next(keys), (), 1)
        params["out_lin_b"][nt] = 0.1 * jax.random.normal(next(keys), (),
                                                          jnp.float32)
        params["mlp"][nt] = (
            _kaiming_uniform(next(keys), (2 * d, d), 2 * d),
            0.1 * jax.random.normal(next(keys), (d,), jnp.float32),
        )
    return params


# -----------------------------------------------------------------------------
if __name__ == "__main__":
    node_types = ["paper", "author"]
    edge_types = [("paper", "to", "author"), ("author", "to", "paper")]
    in_ch = 32
    n_nodes = {"paper": 8, "author": 8}
    n_edges = 16
    batch_size = 2   # static (no device->host sync at trace time)

    root = jax.random.PRNGKey(0)
    k_x, k_e, k_p = jax.random.split(root, 3)

    x_dict = {
        nt: jax.random.normal(jax.random.fold_in(k_x, i),
                              (n_nodes[nt], in_ch), jnp.float32)
        for i, nt in enumerate(node_types)
    }
    edge_index_dict = {}
    for i, et in enumerate(edge_types):
        ks, kd = jax.random.split(jax.random.fold_in(k_e, i))
        src = jax.random.randint(ks, (n_edges,), 0, n_nodes[et[0]])
        dst = jax.random.randint(kd, (n_edges,), 0, n_nodes[et[2]])
        edge_index_dict[et] = jnp.stack([src, dst]).astype(jnp.int32)
    batch_dict = {
        nt: jnp.array([0, 0, 0, 0, 1, 1, 1, 1], dtype=jnp.int32)
        for nt in node_types
    }

    params = init_params(k_p, node_types, edge_types,
                         {nt: in_ch for nt in node_types})

    out = het_sag_pooling(params, x_dict, edge_index_dict, batch_dict,
                          node_types, edge_types, batch_size)
    out = jax.block_until_ready(out)
    assert out.shape == (batch_size, len(node_types) * in_ch), out.shape
    assert bool(jnp.all(jnp.isfinite(out)))
    print("KERNEL_OK")
</pallas_src>

<mosaic_0001>
module attributes {stable_mosaic.version = 11 : i64} {
  func.func @_ln_kqv_kernel(%arg0: i32, %arg1: memref<1x8x32xf32, #tpu.memory_space<vmem>>, %arg2: memref<1x1x32xf32, #tpu.memory_space<vmem>>, %arg3: memref<1x1x32xf32, #tpu.memory_space<vmem>>, %arg4: memref<1x32x128xf32, #tpu.memory_space<vmem>>, %arg5: memref<1x1x128xf32, #tpu.memory_space<vmem>>, %arg6: memref<1x8x128xf32, #tpu.memory_space<vmem>>) attributes {dimension_semantics = [#tpu.dimension_semantics<parallel>], iteration_bounds = array<i64: 2>, scalar_prefetch = 0 : i64, scratch_operands = 0 : i64, tpu.core_type = #tpu.core_type<tc>, window_params = [{transform_indices = @transform_0, window_bounds = array<i64: 1, 8, 32>}, {transform_indices = @transform_1, window_bounds = array<i64: 1, 1, 32>}, {transform_indices = @transform_2, window_bounds = array<i64: 1, 1, 32>}, {transform_indices = @transform_3, window_bounds = array<i64: 1, 32, 128>}, {transform_indices = @transform_4, window_bounds = array<i64: 1, 1, 128>}, {transform_indices = @transform_5, window_bounds = array<i64: 1, 8, 128>}]} {
    %c0 = arith.constant 0 : index
    %c0_0 = arith.constant 0 : index
    %c0_1 = arith.constant 0 : index
    %0 = vector.load %arg1[%c0, %c0_0, %c0_1] : memref<1x8x32xf32, #tpu.memory_space<vmem>>, vector<1x8x32xf32>
    %1 = vector.shape_cast %0 : vector<1x8x32xf32> to vector<8x32xf32>
    %cst = arith.constant dense<0.000000e+00> : vector<8xf32>
    %2 = vector.multi_reduction <add>, %1, %cst [1] : vector<8x32xf32> to vector<8xf32>
    %3 = vector.shape_cast %2 : vector<8xf32> to vector<8x1xf32>
    %cst_2 = arith.constant 3.200000e+01 : f32
    %4 = vector.broadcast %cst_2 : f32 to vector<8x1xf32>
    %5 = arith.divf %3, %4 : vector<8x1xf32>
    %6 = vector.broadcast %5 : vector<8x1xf32> to vector<8x32xf32>
    %7 = arith.subf %1, %6 : vector<8x32xf32>
    %8 = arith.mulf %7, %7 : vector<8x32xf32>
    %cst_3 = arith.constant dense<0.000000e+00> : vector<8xf32>
    %9 = vector.multi_reduction <add>, %8, %cst_3 [1] : vector<8x32xf32> to vector<8xf32>
    %10 = vector.shape_cast %9 : vector<8xf32> to vector<8x1xf32>
    %cst_4 = arith.constant 3.200000e+01 : f32
    %11 = vector.broadcast %cst_4 : f32 to vector<8x1xf32>
    %12 = arith.divf %10, %11 : vector<8x1xf32>
    %cst_5 = arith.constant 9.99999974E-6 : f32
    %13 = vector.broadcast %cst_5 : f32 to vector<8x1xf32>
    %14 = arith.addf %12, %13 : vector<8x1xf32>
    %15 = math.rsqrt %14 : vector<8x1xf32>
    %16 = vector.broadcast %15 : vector<8x1xf32> to vector<8x32xf32>
    %17 = arith.mulf %7, %16 : vector<8x32xf32>
    %c0_6 = arith.constant 0 : index
    %c0_7 = arith.constant 0 : index
    %c0_8 = arith.constant 0 : index
    %18 = vector.load %arg2[%c0_6, %c0_7, %c0_8] : memref<1x1x32xf32, #tpu.memory_space<vmem>>, vector<1x1x32xf32>
    %19 = vector.shape_cast %18 : vector<1x1x32xf32> to vector<1x32xf32>
    %20 = vector.broadcast %19 : vector<1x32xf32> to vector<8x32xf32>
    %21 = arith.mulf %17, %20 : vector<8x32xf32>
    %c0_9 = arith.constant 0 : index
    %c0_10 = arith.constant 0 : index
    %c0_11 = arith.constant 0 : index
    %22 = vector.load %arg3[%c0_9, %c0_10, %c0_11] : memref<1x1x32xf32, #tpu.memory_space<vmem>>, vector<1x1x32xf32>
    %23 = vector.shape_cast %22 : vector<1x1x32xf32> to vector<1x32xf32>
    %24 = vector.broadcast %23 : vector<1x32xf32> to vector<8x32xf32>
    %25 = arith.addf %21, %24 : vector<8x32xf32>
    %c0_12 = arith.constant 0 : index
    %c0_13 = arith.constant 0 : index
    %c0_14 = arith.constant 0 : index
    %26 = vector.load %arg4[%c0_12, %c0_13, %c0_14] : memref<1x32x128xf32, #tpu.memory_space<vmem>>, vector<1x32x128xf32>
    %27 = vector.shape_cast %26 : vector<1x32x128xf32> to vector<32x128xf32>
    %cst_15 = arith.constant dense<0.000000e+00> : vector<8x128xf32>
    %28 = tpu.matmul %25, %27, %cst_15 {dimension_numbers = #tpu.dot_dimension_numbers<[1], [0], [0], [1], [0, 0, 1, 1], [], []>} : vector<8x32xf32>, vector<32x128xf32>, vector<8x128xf32> -> vector<8x128xf32>
    %c0_16 = arith.constant 0 : index
    %c0_17 = arith.constant 0 : index
    %c0_18 = arith.constant 0 : index
    %29 = vector.load %arg5[%c0_16, %c0_17, %c0_18] : memref<1x1x128xf32, #tpu.memory_space<vmem>>, vector<1x1x128xf32>
    %30 = vector.shape_cast %29 : vector<1x1x128xf32> to vector<1x128xf32>
    %31 = vector.broadcast %30 : vector<1x128xf32> to vector<8x128xf32>
    %32 = arith.addf %28, %31 : vector<8x128xf32>
    %c0_19 = arith.constant 0 : index
    %c0_20 = arith.constant 0 : index
    %c0_21 = arith.constant 0 : index
    %33 = vector.load %arg6[%c0_19, %c0_20, %c0_21] : memref<1x8x128xf32, #tpu.memory_space<vmem>>, vector<1x8x128xf32>
    %34 = vector.shape_cast %33 : vector<1x8x128xf32> to vector<8x128xf32>
    %35 = vector.shape_cast %32 : vector<8x128xf32> to vector<1x8x128xf32>
    tpu.vector_store %arg6[%c0_19, %c0_20, %c0_21], %35 {strides = array<i32>} : memref<1x8x128xf32, #tpu.memory_space<vmem>>, vector<1x8x128xf32>,
    return
  }
  func.func @transform_0(%arg0: i32) -> (i32, i32, i32) {
    %c0_i32 = arith.constant 0 : i32
    %c0_i32_0 = arith.constant 0 : i32
    %c0_i32_1 = arith.constant 0 : i32
    return %arg0, %c0_i32, %c0_i32_0 : i32, i32, i32
  }
  func.func @transform_1(%arg0: i32) -> (i32, i32, i32) {
    %c0_i32 = arith.constant 0 : i32
    %c0_i32_0 = arith.constant 0 : i32
    %c0_i32_1 = arith.constant 0 : i32
    return %arg0, %c0_i32, %c0_i32_0 : i32, i32, i32
  }
  func.func @transform_2(%arg0: i32) -> (i32, i32, i32) {
    %c0_i32 = arith.constant 0 : i32
    %c0_i32_0 = arith.constant 0 : i32
    %c0_i32_1 = arith.constant 0 : i32
    return %arg0, %c0_i32, %c0_i32_0 : i32, i32, i32
  }
  func.func @transform_3(%arg0: i32) -> (i32, i32, i32) {
    %c0_i32 = arith.constant 0 : i32
    %c0_i32_0 = arith.constant 0 : i32
    %c0_i32_1 = arith.constant 0 : i32
    return %arg0, %c0_i32, %c0_i32_0 : i32, i32, i32
  }
  func.func @transform_4(%arg0: i32) -> (i32, i32, i32) {
    %c0_i32 = arith.constant 0 : i32
    %c0_i32_0 = arith.constant 0 : i32
    %c0_i32_1 = arith.constant 0 : i32
    return %arg0, %c0_i32, %c0_i32_0 : i32, i32, i32
  }
  func.func @transform_5(%arg0: i32) -> (i32, i32, i32) {
    %c0_i32 = arith.constant 0 : i32
    %c0_i32_0 = arith.constant 0 : i32
    %c0_i32_1 = arith.constant 0 : i32
    return %arg0, %c0_i32, %c0_i32_0 : i32, i32, i32
  }
}

</mosaic_0001>

<llo_original>
// kernel: tpu_custom_call.1
$region0: #{tpu_custom_call.1}
  #allocation0 [shape = 'u32[]', space=smem, size = 0x4, offset = 0x4, fixed_abs, tag = 'smem constant byte address 0x4 - core index']
  #allocation1 [shape = 'u32[144,128]{1,0:T(1,128)}', space=vmem, size = 0x12000, scoped, tag = 'internal scratch']
  %s0 = inlined_call_operand.hbm [shape: f32[2,8,32], index: 0, kind: input, shape index: {}]
  %s1 = inlined_call_operand.hbm [shape: f32[2,1,32], index: 1, kind: input, shape index: {}]
  %s2 = inlined_call_operand.vmem [shape: f32[2,1,32], index: 2, kind: input, shape index: {}]
  %s3 = inlined_call_operand.hbm [shape: f32[2,32,128], index: 3, kind: input, shape index: {}]
  %s4 = inlined_call_operand.vmem [shape: f32[2,1,128], index: 4, kind: input, shape index: {}]
  %s5 = inlined_call_operand.hbm [shape: f32[2,8,128], index: 5, kind: output, shape index: {}]
  %s6 = sld [smem:[#allocation0]]
  $region65: #{tpu_custom_call.1} parent=0
    _
  %s8 = ssub.s32 1, %s6
  %s9 = scalar_select 0, %s8, %s6
  $region1: #{tpu_custom_call.1} parent=0
    #allocation2 [shape = 'u8[8192]{0}', space=vmem, size = 0x2000, scoped, tag = 'input window, operand 0']
    #allocation3 [shape = 's32[2]{0}', space=sflag, size = 0x8, scoped, tag = 'scoped memory for tpu_custom_call.1']
    #allocation4 [shape = 's32[2]{0}', space=sflag, size = 0x8, scoped, tag = 'scoped memory for tpu_custom_call.1']
    #allocation5 [shape = 'u8[1024]{0}', space=vmem, size = 0x400, scoped, tag = 'input window, operand 1']
    #allocation6 [shape = 's32[2]{0}', space=sflag, size = 0x8, scoped, tag = 'scoped memory for tpu_custom_call.1']
    #allocation7 [shape = 'u8[32768]{0}', space=vmem, size = 0x8000, scoped, tag = 'input window, operand 3']
    #allocation8 [shape = 'u8[8192]{0}', space=vmem, size = 0x2000, scoped, tag = 'output window, operand 0']
    %10 = vsyncpa [#allocation3], 0
    %s11 = scalar_lea.sflag [#allocation3], 1
    %12 = vsyncpa %s11, 0
    %13 = vsyncpa [#allocation6], 0
    %s14 = scalar_lea.sflag [#allocation6], 1
    %15 = vsyncpa %s14, 0
    %16 = vsyncpa [#allocation4], 0
    %s17 = scalar_lea.sflag [#allocation4], 1
    %18 = vsyncpa %s17, 0
    loop: start=0, step=1, limit=4
    $region2: #{tpu_custom_call.1} parent=1 // loop_pre_header
      _
    $region3: #{tpu_custom_call.1} parent=1 // loop_header
      %s20 = sphi 0, %s24
      %p21 = scmp.ge.s32.totalorder %s20, 4
      %s30 = sphi 0, %s32
      %s33 = sphi 0, %s30
      %s34 = sphi 0, %s33
      %s50 = sphi 0, %s34
      %s56 = sphi 0, %s58
      %s59 = sphi 0, %s56
      %s60 = sphi 0, %s59
      %s76 = sphi 0, %s60
      %s82 = sphi 0, %s84
      %s85 = sphi 0, %s82
      %s86 = sphi 0, %s85
      %s102 = sphi 0, %s86
      %s108 = sphi 0, %s110
      %s111 = sphi 0, %s108
      %s112 = sphi 0, %s111
      %s128 = sphi 0, %s112
      %s134 = sphi 0, %s136
      %s137 = sphi 0, %s134
      %s138 = sphi 0, %s137
      %s154 = sphi 0, %s138
      %s160 = sphi 0, %s162
      %s163 = sphi 0, %s160
      %s164 = sphi 0, %s163
      %s180 = sphi 0, %s164
    $region4: #{tpu_custom_call.1} parent=1 // loop_header_branch
      %23 = sbr.rel (%p21) target = $region8
    $region5: #{tpu_custom_call.1} parent=1 // loop_body
      %s25 = ssub.s32 %s20, 1
      %s26 = ssub.s32 %s20, 2
      %s27 = sadd.s32 %s20, 1
      %s28 = ssub.s32 %s20, %s27
      %p29 = scmp.eq.s32.totalorder %s28, 0
      %s31 = sadd.s32 %s30, 1
      %s32 = scalar_select %p29, %s30, %s31
      %p35 = pneg %p29
      %p36 = scmp.eq.s32.totalorder %s20, 1
      %p37 = por %p35, %p36
      %p38 = scmp.ne.s32.totalorder %s30, %s33
      %p39 = scmp.eq.s32.totalorder %s20, 0
      %p40 = por %p38, %p39
      %p41 = scmp.ne.s32.totalorder %s30, %s33
      %p42 = scmp.eq.s32.totalorder %s25, 1
      %p43 = por %p41, %p42
      %p44 = scmp.ne.s32.totalorder %s33, %s34
      %p45 = scmp.eq.s32.totalorder %s25, 0
      %p46 = por %p44, %p45
      %p47 = scmp.ne.s32.totalorder %s33, %s34
      %p48 = scmp.eq.s32.totalorder %s26, 1
      %p49 = por %p47, %p48
      %p51 = scmp.ne.s32.totalorder %s34, %s50
      %p52 = scmp.eq.s32.totalorder %s26, 0
      %p53 = por %p51, %p52
      %s54 = ssub.s32 %s20, %s27
      %p55 = scmp.eq.s32.totalorder %s54, 0
      %s57 = sadd.s32 %s56, 1
      %s58 = scalar_select %p55, %s56, %s57
      %p61 = pneg %p55
      %p62 = scmp.eq.s32.totalorder %s20, 1
      %p63 = por %p61, %p62
      %p64 = scmp.ne.s32.totalorder %s56, %s59
      %p65 = scmp.eq.s32.totalorder %s20, 0
      %p66 = por %p64, %p65
      %p67 = scmp.ne.s32.totalorder %s56, %s59
      %p68 = scmp.eq.s32.totalorder %s25, 1
      %p69 = por %p67, %p68
      %p70 = scmp.ne.s32.totalorder %s59, %s60
      %p71 = scmp.eq.s32.totalorder %s25, 0
      %p72 = por %p70, %p71
      %p73 = scmp.ne.s32.totalorder %s59, %s60
      %p74 = scmp.eq.s32.totalorder %s26, 1
      %p75 = por %p73, %p74
      %p77 = scmp.ne.s32.totalorder %s60, %s76
      %p78 = scmp.eq.s32.totalorder %s26, 0
      %p79 = por %p77, %p78
      %s80 = ssub.s32 %s20, %s27
      %p81 = scmp.eq.s32.totalorder %s80, 0
      %s83 = sadd.s32 %s82, 1
      %s84 = scalar_select %p81, %s82, %s83
      %p87 = pneg %p81
      %p88 = scmp.eq.s32.totalorder %s20, 1
      %p89 = por %p87, %p88
      %p90 = scmp.ne.s32.totalorder %s82, %s85
      %p91 = scmp.eq.s32.totalorder %s20, 0
      %p92 = por %p90, %p91
      %p93 = scmp.ne.s32.totalorder %s82, %s85
      %p94 = scmp.eq.s32.totalorder %s25, 1
      %p95 = por %p93, %p94
      %p96 = scmp.ne.s32.totalorder %s85, %s86
      %p97 = scmp.eq.s32.totalorder %s25, 0
      %p98 = por %p96, %p97
      %p99 = scmp.ne.s32.totalorder %s85, %s86
      %p100 = scmp.eq.s32.totalorder %s26, 1
      %p101 = por %p99, %p100
      %p103 = scmp.ne.s32.totalorder %s86, %s102
      %p104 = scmp.eq.s32.totalorder %s26, 0
      %p105 = por %p103, %p104
      %s106 = ssub.s32 %s20, %s27
      %p107 = scmp.eq.s32.totalorder %s106, 0
      %s109 = sadd.s32 %s108, 1
      %s110 = scalar_select %p107, %s108, %s109
      %p113 = pneg %p107
      %p114 = scmp.eq.s32.totalorder %s20, 1
      %p115 = por %p113, %p114
      %p116 = scmp.ne.s32.totalorder %s108, %s111
      %p117 = scmp.eq.s32.totalorder %s20, 0
      %p118 = por %p116, %p117
      %p119 = scmp.ne.s32.totalorder %s108, %s111
      %p120 = scmp.eq.s32.totalorder %s25, 1
      %p121 = por %p119, %p120
      %p122 = scmp.ne.s32.totalorder %s111, %s112
      %p123 = scmp.eq.s32.totalorder %s25, 0
      %p124 = por %p122, %p123
      %p125 = scmp.ne.s32.totalorder %s111, %s112
      %p126 = scmp.eq.s32.totalorder %s26, 1
      %p127 = por %p125, %p126
      %p129 = scmp.ne.s32.totalorder %s112, %s128
      %p130 = scmp.eq.s32.totalorder %s26, 0
      %p131 = por %p129, %p130
      %s132 = ssub.s32 %s20, %s27
      %p133 = scmp.eq.s32.totalorder %s132, 0
      %s135 = sadd.s32 %s134, 1
      %s136 = scalar_select %p133, %s134, %s135
      %p139 = pneg %p133
      %p140 = scmp.eq.s32.totalorder %s20, 1
      %p141 = por %p139, %p140
      %p142 = scmp.ne.s32.totalorder %s134, %s137
      %p143 = scmp.eq.s32.totalorder %s20, 0
      %p144 = por %p142, %p143
      %p145 = scmp.ne.s32.totalorder %s134, %s137
      %p146 = scmp.eq.s32.totalorder %s25, 1
      %p147 = por %p145, %p146
      %p148 = scmp.ne.s32.totalorder %s137, %s138
      %p149 = scmp.eq.s32.totalorder %s25, 0
      %p150 = por %p148, %p149
      %p151 = scmp.ne.s32.totalorder %s137, %s138
      %p152 = scmp.eq.s32.totalorder %s26, 1
      %p153 = por %p151, %p152
      %p155 = scmp.ne.s32.totalorder %s138, %s154
      %p156 = scmp.eq.s32.totalorder %s26, 0
      %p157 = por %p155, %p156
      %s158 = ssub.s32 %s20, %s27
      %p159 = scmp.eq.s32.totalorder %s158, 0
      %s161 = sadd.s32 %s160, 1
      %s162 = scalar_select %p159, %s160, %s161
      %p165 = pneg %p159
      %p166 = scmp.eq.s32.totalorder %s20, 1
      %p167 = por %p165, %p166
      %p168 = scmp.ne.s32.totalorder %s160, %s163
      %p169 = scmp.eq.s32.totalorder %s20, 0
      %p170 = por %p168, %p169
      %p171 = scmp.ne.s32.totalorder %s160, %s163
      %p172 = scmp.eq.s32.totalorder %s25, 1
      %p173 = por %p171, %p172
      %p174 = scmp.ne.s32.totalorder %s163, %s164
      %p175 = scmp.eq.s32.totalorder %s25, 0
      %p176 = por %p174, %p175
      %p177 = scmp.ne.s32.totalorder %s163, %s164
      %p178 = scmp.eq.s32.totalorder %s26, 1
      %p179 = por %p177, %p178
      %p181 = scmp.ne.s32.totalorder %s164, %s180
      %p182 = scmp.eq.s32.totalorder %s26, 0
      %p183 = por %p181, %p182
      %p184 = scmp.le.s32.totalorder 1, %s20
      %p185 = scmp.lt.s32.totalorder %s20, 3
      %p186 = pnand %p184, %p185
      %p187 = pneg %p186
      // Predicated region
      $region9: #{tpu_custom_call.1} parent=5 // pred_check
        _
      $region10: #{tpu_custom_call.1} parent=5 // pred_check_branch
        %189 = sbr.rel (%p186) target = $region12
      $region11: #{tpu_custom_call.1} parent=5 // pred_region
        %s190 = ssub.s32 %s20, 1
      $region12: #{tpu_custom_call.1} parent=5 // pred_fallthru
        _
      %p191 = scmp.lt.s32.totalorder %s20, 2
      // Predicated region
      $region13: #{tpu_custom_call.1} parent=5 // pred_check
        %p192 = pneg %p191
      $region14: #{tpu_custom_call.1} parent=5 // pred_check_branch
        %194 = sbr.rel (%p192) target = $region16
      $region15: #{tpu_custom_call.1} parent=5 // pred_region
        // Predicated region
        $region17: #{tpu_custom_call.1} parent=15 // pred_check
          %p195 = pneg %p40
        $region18: #{tpu_custom_call.1} parent=15 // pred_check_branch
          %197 = sbr.rel (%p195) target = $region20
        $region19: #{tpu_custom_call.1} parent=15 // pred_region
          %s198 = sand.u32 %s30, 1
          %s199 = scalar_lea.sflag [#allocation3], %s198
          %s200 = sand.u32 %s30, 1
          %s201 = smul.addr %s200, 8
          %s202 = scalar_lea.vmem [#allocation2], %s201
          %s204 = ssub.s32 128, 128
          %205 = vsyncadd %s199, %s204
          %s206 = smul.addr %s20, 128
          %s207 = scalar_lea.hbm %s0, %s206
          %s209 = sshll.u32 %s202, 4
          %s210 = int_to_ptr.vmem [resolvable:$true] %s209
          %212 = dma.hbm_to_vmem [thread:$0]  %s207, 128, %s210, %s199
        $region20: #{tpu_custom_call.1} parent=15 // pred_fallthru
          _
        // Predicated region
        $region21: #{tpu_custom_call.1} parent=15 // pred_check
          %p213 = pneg %p66
        $region22: #{tpu_custom_call.1} parent=15 // pred_check_branch
          %215 = sbr.rel (%p213) target = $region24
        $region23: #{tpu_custom_call.1} parent=15 // pred_region
          %s216 = sand.u32 %s20, 1
          %s217 = scalar_lea.sflag [#allocation6], %s216
          %s218 = sand.u32 %s56, 1
          %s219 = scalar_lea.vmem [#allocation5], %s218
          %s221 = ssub.s32 16, 16
          %222 = vsyncadd %s217, %s221
          %s223 = smul.addr %s20, 16
          %s224 = scalar_lea.hbm %s1, %s223
          %s226 = sshll.u32 %s219, 4
          %s227 = int_to_ptr.vmem [resolvable:$true] %s226
          %229 = dma.hbm_to_vmem [thread:$0]  %s224, 16, %s227, %s217
        $region24: #{tpu_custom_call.1} parent=15 // pred_fallthru
          _
        // Predicated region
        $region25: #{tpu_custom_call.1} parent=15 // pred_check
          %p230 = pneg %p92
        $region26: #{tpu_custom_call.1} parent=15 // pred_check_branch
          %232 = sbr.rel (%p230) target = $region28
        $region27: #{tpu_custom_call.1} parent=15 // pred_region
          %p233 = scmp.lt.s32.totalorder %s20, 1
          %s234 = scalar_select %p233, %s20, 1
          %s235 = scalar_lea.vmem %s2, %s234
        $region28: #{tpu_custom_call.1} parent=15 // pred_fallthru
          _
        // Predicated region
        $region29: #{tpu_custom_call.1} parent=15 // pred_check
          %p236 = pneg %p118
        $region30: #{tpu_custom_call.1} parent=15 // pred_check_branch
          %238 = sbr.rel (%p236) target = $region32
        $region31: #{tpu_custom_call.1} parent=15 // pred_region
          %s239 = sand.u32 %s20, 1
          %s240 = scalar_lea.sflag [#allocation6], %s239
          %s241 = sand.u32 %s108, 1
          %s242 = smul.addr %s241, 32
          %s243 = scalar_lea.vmem [#allocation7], %s242
          %s245 = ssub.s32 512, 512
          %246 = vsyncadd %s240, %s245
          %s247 = smul.addr %s20, 4
          %s248 = smul.addr %s247, 128
          %s249 = scalar_lea.hbm %s3, %s248
          %s250 = sshll.u32 %s243, 4
          %s251 = int_to_ptr.vmem [resolvable:$true] %s250
          %256 = dma.hbm_to_vmem [thread:$0]  %s249, 512, %s251, %s240, 128, 128, 8
        $region32: #{tpu_custom_call.1} parent=15 // pred_fallthru
          _
        // Predicated region
        $region33: #{tpu_custom_call.1} parent=15 // pred_check
          %p257 = pneg %p144
        $region34: #{tpu_custom_call.1} parent=15 // pred_check_branch
          %259 = sbr.rel (%p257) target = $region36
        $region35: #{tpu_custom_call.1} parent=15 // pred_region
          %p260 = scmp.lt.s32.totalorder %s20, 1
          %s261 = scalar_select %p260, %s20, 1
          %s262 = scalar_lea.vmem %s4, %s261
        $region36: #{tpu_custom_call.1} parent=15 // pred_fallthru
          _
      $region16: #{tpu_custom_call.1} parent=5 // pred_fallthru
        _
      %p263 = scmp.le.s32.totalorder 1, %s20
      %p264 = scmp.lt.s32.totalorder %s20, 3
      %p265 = pnand %p263, %p264
      %p266 = pneg %p265
      // Predicated region
      $region37: #{tpu_custom_call.1} parent=5 // pred_check
        _
      $region38: #{tpu_custom_call.1} parent=5 // pred_check_branch
        %268 = sbr.rel (%p265) target = $region40
      $region39: #{tpu_custom_call.1} parent=5 // pred_region
        %s269 = ssub.s32 %s20, 1
        %s270 = sand.u32 %s33, 1
        %s271 = scalar_lea.sflag [#allocation3], %s270
        %s272 = sand.u32 %s33, 1
        %s273 = smul.addr %s272, 8
        %s274 = scalar_lea.vmem [#allocation2], %s273
        // Predicated region
        $region41: #{tpu_custom_call.1} parent=39 // pred_check
          %p275 = pneg %p46
        $region42: #{tpu_custom_call.1} parent=39 // pred_check_branch
          %277 = sbr.rel (%p275) target = $region44
        $region43: #{tpu_custom_call.1} parent=39 // pred_region
          %278 = dma.done %s271, 128
        $region44: #{tpu_custom_call.1} parent=39 // pred_fallthru
          _
        %s279 = sand.u32 %s25, 1
        %s280 = scalar_lea.sflag [#allocation6], %s279
        %s281 = sand.u32 %s59, 1
        %s282 = scalar_lea.vmem [#allocation5], %s281
        // Predicated region
        $region45: #{tpu_custom_call.1} parent=39 // pred_check
          %p283 = pneg %p72
        $region46: #{tpu_custom_call.1} parent=39 // pred_check_branch
          %285 = sbr.rel (%p283) target = $region48
        $region47: #{tpu_custom_call.1} parent=39 // pred_region
          %286 = dma.done %s280, 16
        $region48: #{tpu_custom_call.1} parent=39 // pred_fallthru
          _
        %s287 = sand.u32 %s25, 1
        %s288 = scalar_lea.sflag [#allocation6], %s287
        %s289 = sand.u32 %s111, 1
        %s290 = smul.addr %s289, 32
        %s291 = scalar_lea.vmem [#allocation7], %s290
        // Predicated region
        $region49: #{tpu_custom_call.1} parent=39 // pred_check
          %p292 = pneg %p124
        $region50: #{tpu_custom_call.1} parent=39 // pred_check_branch
          %294 = sbr.rel (%p292) target = $region52
        $region51: #{tpu_custom_call.1} parent=39 // pred_region
          %295 = dma.done %s288, 512
        $region52: #{tpu_custom_call.1} parent=39 // pred_fallthru
          _
        %s296 = sand.u32 %s33, 1
        %s297 = scalar_lea.sflag [#allocation3], %s296
        %s298 = sand.u32 %s33, 1
        %s299 = smul.addr %s298, 8
        %s300 = scalar_lea.vmem [#allocation2], %s299
        %p301 = pneg %p46
        %p302 = pneg %p43
        %s303 = sand.u32 %s25, 1
        %s304 = scalar_lea.sflag [#allocation6], %s303
        %s305 = sand.u32 %s59, 1
        %s306 = scalar_lea.vmem [#allocation5], %s305
        %p307 = pneg %p72
        %p308 = pneg %p69
        %p309 = scmp.lt.s32.totalorder %s25, 1
        %s310 = scalar_select %p309, %s25, 1
        %s311 = scalar_lea.vmem %s2, %s310
        %p312 = pneg %p98
        %p313 = pneg %p95
        %s314 = sand.u32 %s25, 1
        %s315 = scalar_lea.sflag [#allocation6], %s314
        %s316 = sand.u32 %s111, 1
        %s317 = smul.addr %s316, 32
        %s318 = scalar_lea.vmem [#allocation7], %s317
        %p319 = pneg %p124
        %p320 = pneg %p121
        %p321 = scmp.lt.s32.totalorder %s25, 1
        %s322 = scalar_select %p321, %s25, 1
        %s323 = scalar_lea.vmem %s4, %s322
        %p324 = pneg %p150
        %p325 = pneg %p147
        %p326 = pneg %p176
        %p327 = pneg %p173
        %s328 = sand.u32 %s163, 1
        %s329 = scalar_lea.sflag [#allocation4], %s328
        %s330 = sand.u32 %s163, 1
        %s331 = smul.addr %s330, 8
        %s332 = scalar_lea.vmem [#allocation8], %s331
        %p333 = scmp.lt.s32.totalorder %s25, 1
        %s334 = scalar_select %p333, %s25, 1
        %s335 = scalar_lea.vmem %s2, %s334
        %p336 = scmp.lt.s32.totalorder %s25, 1
        %s337 = scalar_select %p336, %s25, 1
        %s338 = scalar_lea.vmem %s4, %s337
        %v339 = vld [vmem:[%s274] sm:$0xff]
        %vm340 = vcmask 261120
        %v341 = vsel %vm340, %v339, 0.0
        %342 = vadd.xlane.f32.xlu0 %v341
        %v343 = vpop.xlane.xlu0 %342
        %v344 = vrcp.pop 32.0
        %v345 = vmul.f32 %v343, %v344
        %v346 = vsub.f32 %v339, %v345
        %v347 = vmul.f32 %v346, %v346
        %v348 = vsel %vm340, %v347, 0.0
        %349 = vadd.xlane.f32.xlu0 %v348
        %v350 = vpop.xlane.xlu0 %349
        %v351 = vmul.f32 %v350, %v344
        %v352 = vadd.f32 %v351, 1e-05
        %v353 = vrsqrt.pop %v352
        %v354 = vmul.f32 %v346, %v353
        %v355 = vld [vmem:[%s282] sm:$0x1]
        %v357 = vlaneseq
        %v358 = vshrl.u32 %v357, 7
        %v359 = vsub.s32 0, %v358
        %v360 = vrot.slane %v355, %v359
        %v362 = vmul.f32 %v354, %v360
        %v363 = vld [vmem:[%s335] sm:$0x1]
        %v365 = vlaneseq
        %v366 = vshrl.u32 %v365, 7
        %v367 = vsub.s32 0, %v366
        %v368 = vrot.slane %v363, %v367
        %v370 = vadd.f32 %v362, %v368
        %v371 = vld [vmem:[%s291] sm:$0xff]
        %v372 = vld [vmem:[%s291 + $0x8] sm:$0xff]
        %v373 = vld [vmem:[%s291 + $0x10] sm:$0xff]
        %v374 = vld [vmem:[%s291 + $0x18] sm:$0xff]
        %v375 = vld [vmem:[%s338] sm:$0x1]
        %v377 = vlaneseq
        %v378 = vshrl.u32 %v377, 7
        %v379 = vsub.s32 0, %v378
        %v380 = vrot.slane %v375, %v379
        %v383 = vsel %vm340, %v370, 0
        %385 = vmatprep.subr.mxu0 0.0
        %386 = vmatpush1.msra.mxu0 0.0
        %387 = vmatprep.subr.mxu0 0.0
        %388 = vmatpush1.msra.mxu0 0.0
        %389 = vmatprep.subr.mxu0 0.0
        %390 = vmatpush1.msra.mxu0 0.0
        %391 = vmatprep.subr.mxu0 0.0
        %392 = vmatpush1.msra.mxu0 0.0
        %393 = vmatprep.subr.mxu0 0.0
        %394 = vmatpush1.msra.mxu0 0.0
        %395 = vmatprep.subr.mxu0 0.0
        %396 = vmatpush1.msra.mxu0 0.0
        %397 = vmatprep.subr.mxu0 0.0
        %398 = vmatpush1.msra.mxu0 0.0
        %399 = vmatprep.subr.mxu0 0.0
        %400 = vmatpush1.msra.mxu0 0.0
        %401 = vmatprep.subr.mxu0 0.0
        %402 = vmatpush1.msra.mxu0 0.0
        %403 = vmatprep.subr.mxu0 0.0
        %404 = vmatpush1.msra.mxu0 0.0
        %405 = vmatprep.subr.mxu0 0.0
        %406 = vmatpush1.msra.mxu0 0.0
        %407 = vmatprep.subr.mxu0 0.0
        %408 = vmatpush1.msra.mxu0 0.0
        %409 = vmatprep.subr.mxu0 0.0
        %410 = vmatpush1.msra.mxu0 %v374
        %411 = vmatprep.subr.mxu0 0.0
        %412 = vmatpush1.msra.mxu0 %v373
        %413 = vmatprep.subr.mxu0 0.0
        %414 = vmatpush1.msra.mxu0 %v372
        %415 = vmatprep.subr.mxu0 0.0
        %416 = vmatpush1.msra.mxu0 %v371
        %417 = vmatprep.subr.mxu0 0.0
        %418 = vmatpush2.msra.mxu0 0.0
        %419 = vmatprep.subr.mxu0 0.0
        %420 = vmatpush2.msra.mxu0 0.0
        %421 = vmatprep.subr.mxu0 0.0
        %422 = vmatpush2.msra.mxu0 0.0
        %423 = vmatprep.subr.mxu0 0.0
        %424 = vmatpush2.msra.mxu0 0.0
        %425 = vmatprep.subr.mxu0 0.0
        %426 = vmatpush2.msra.mxu0 0.0
        %427 = vmatprep.subr.mxu0 0.0
        %428 = vmatpush2.msra.mxu0 0.0
        %429 = vmatprep.subr.mxu0 0.0
        %430 = vmatpush2.msra.mxu0 0.0
        %431 = vmatprep.subr.mxu0 0.0
        %432 = vmatpush2.msra.mxu0 0.0
        %433 = vmatprep.subr.mxu0 0.0
        %434 = vmatpush2.msra.mxu0 0.0
        %435 = vmatprep.subr.mxu0 0.0
        %436 = vmatpush2.msra.mxu0 0.0
        %437 = vmatprep.subr.mxu0 0.0
        %438 = vmatpush2.msra.mxu0 0.0
        %439 = vmatprep.subr.mxu0 0.0
        %440 = vmatpush2.msra.mxu0 0.0
        %441 = vmatprep.subr.mxu0 0.0
        %442 = vmatpush2.msra.mxu0 0.0
        %443 = vmatprep.subr.mxu0 0.0
        %444 = vmatpush2.msra.mxu0 0.0
        %445 = vmatprep.subr.mxu0 0.0
        %446 = vmatpush2.msra.mxu0 0.0
        %447 = vmatprep.subr.mxu0 0.0
        %448 = vmatpush2.msra.mxu0 0.0
        %449 = vmatprep.mubr.f32.mxu0 0.0
        %450 = vmatmul.mubr.f32.gmra.mxu0 %v383
        %v451 = vpop.f32.mrf.mxu0
        %v452 = vadd.f32 %v380, %v451
        %v453 = vpop.f32.mrf.mxu0
        %454 = vdwg.mxu0
        %455 = vst [vmem:[%s332] sm:$0xff] %v452
        %s456 = sand.u32 %s163, 1
        %s457 = scalar_lea.sflag [#allocation4], %s456
        %s458 = sand.u32 %s163, 1
        %s459 = smul.addr %s458, 8
        %s460 = scalar_lea.vmem [#allocation8], %s459
        // Predicated region
        $region53: #{tpu_custom_call.1} parent=39 // pred_check
          %p461 = pneg %p173
        $region54: #{tpu_custom_call.1} parent=39 // pred_check_branch
          %463 = sbr.rel (%p461) target = $region56
        $region55: #{tpu_custom_call.1} parent=39 // pred_region
          %s465 = ssub.s32 128, 128
          %466 = vsyncadd %s457, %s465
          %s467 = smul.addr %s25, 128
          %s468 = scalar_lea.hbm %s5, %s467
          %s470 = sshll.u32 %s460, 4
          %s471 = int_to_ptr.vmem [resolvable:$true] %s470
          %473 = dma.vmem_to_hbm [thread:$0]  %s471, 128, %s468, %s457
        $region56: #{tpu_custom_call.1} parent=39 // pred_fallthru
          _
      $region40: #{tpu_custom_call.1} parent=5 // pred_fallthru
        _
      %p474 = scmp.le.s32.totalorder 2, %s20
      // Predicated region
      $region57: #{tpu_custom_call.1} parent=5 // pred_check
        %p475 = pneg %p474
      $region58: #{tpu_custom_call.1} parent=5 // pred_check_branch
        %477 = sbr.rel (%p475) target = $region60
      $region59: #{tpu_custom_call.1} parent=5 // pred_region
        %s478 = ssub.s32 %s20, 2
        // Predicated region
        $region61: #{tpu_custom_call.1} parent=59 // pred_check
          %p479 = pneg %p179
        $region62: #{tpu_custom_call.1} parent=59 // pred_check_branch
          %481 = sbr.rel (%p479) target = $region64
        $region63: #{tpu_custom_call.1} parent=59 // pred_region
          %s482 = sand.u32 %s164, 1
          %s483 = scalar_lea.sflag [#allocation4], %s482
          %s484 = sand.u32 %s164, 1
          %s485 = smul.addr %s484, 8
          %s486 = scalar_lea.vmem [#allocation8], %s485
          %487 = dma.done %s483, 128
        $region64: #{tpu_custom_call.1} parent=59 // pred_fallthru
          _
      $region60: #{tpu_custom_call.1} parent=5 // pred_fallthru
        _
    $region6: #{tpu_custom_call.1} parent=1 // loop_footer
      %s24 = sadd.s32 1, %s20
    $region7: #{tpu_custom_call.1} parent=1 // loop_footer_branch
      %19 = sbr.rel target = $region3
    $region8: #{tpu_custom_call.1} parent=1 // loop_exit
      _
    %488 = vsyncpa [#allocation3], 1
    %s489 = scalar_lea.sflag [#allocation3], 1
    %490 = vsyncpa %s489, 1
    %491 = vsyncpa [#allocation6], 1
    %s492 = scalar_lea.sflag [#allocation6], 1
    %493 = vsyncpa %s492, 1
    %494 = vsyncpa [#allocation4], 1
    %s495 = scalar_lea.sflag [#allocation4], 1
    %496 = vsyncpa %s495, 1

</llo_original>
